<compile_context>
chip_gen: v5e
topology: v5e:2x2
jax: 0.10.0
libtpu: 0.0.40
codegen_flags: <defaults>
</compile_context>

<pallas_src>
import jax
import jax.numpy as jnp
from jax.experimental import pallas as pl
from jax.experimental.pallas import tpu as pltpu


def _round_up(x, m):
    return ((x + m - 1) // m) * m


def _pick_tile(extent, preferred, align):
    """Largest tile <= `preferred` that divides the `align`-rounded extent.

    Returns (tile, padded_extent).  Because the tile divides the rounded
    extent, padding is only ever the sub-`align` remainder, never a full tile.
    """
    ext = _round_up(extent, align)
    if ext <= preferred:
        return ext, ext
    tile = align
    for cand in range(preferred, align - 1, -align):
        if ext % cand == 0:
            tile = cand
            break
    return tile, ext


def lin_kernel(x_ref, w_ref, b_ref, o_ref):
    k = pl.program_id(2)
    partial = jnp.dot(
        x_ref[...], w_ref[...], preferred_element_type=jnp.float32
    )

    @pl.when(k == 0)
    def _():
        # First K step: plain write (no zero-fill pass) with the bias folded in
        # here — addition is commutative, so this equals a last-step bias add.
        o_ref[...] = partial + b_ref[...]

    @pl.when(k > 0)
    def _():
        # Output block is resident across k (out index_map ignores k), so we
        # accumulate straight into it — no scratch accumulator needed.
        o_ref[...] += partial


def lin_forward(x, w, b, *, tm=256, tn=512, tk=512, cast_inputs_to_bf16=False):
    """x: (M, K), w: (K, N), b: (N,) -> (M, N), matching torch `inp @ w + b`."""
    M, K = x.shape
    K2, N = w.shape
    assert K == K2
    assert b.shape == (N,)

    out_dtype = x.dtype

    # Tile / padded-extent selection.
    #   M: sublane (8) alignment; N/K: lane (128) alignment.
    # Preferred N/K tiles are >=256 so a 2x256x256 MXU (v6e/v7x) is filled per
    # push; for small problems the tile collapses to the (rounded) extent.
    tm, Mp = _pick_tile(M, tm, 8)
    tn, Np = _pick_tile(N, tn, 128)
    tk, Kp = _pick_tile(K, tk, 128)

    # Keep >=2 parallel (i, j) blocks when there is enough work so both
    # TensorCores on a multi-core chip (v7x) stay busy.
    if (Mp // tm) * (Np // tn) == 1 and Mp * Np >= 2 * 128 * 256:
        if tn % 256 == 0:
            tn //= 2
        elif tm % 16 == 0:
            tm //= 2

    # Only the sub-tile remainder is padded (exact zeros -> math unchanged).
    xp = x if (Mp == M and Kp == K) else jnp.pad(x, ((0, Mp - M), (0, Kp - K)))
    wp = w if (Kp == K and Np == N) else jnp.pad(w, ((0, Kp - K), (0, Np - N)))
    bp = (b if Np == N else jnp.pad(b, (0, Np - N))).reshape(1, Np)
    bp = bp.astype(jnp.float32)

    if cast_inputs_to_bf16:
        # Optional accuracy trade-off: native bf16 MXU passes + half the
        # weight-stream bytes; accumulation stays f32 in the kernel.
        xp = xp.astype(jnp.bfloat16)
        wp = wp.astype(jnp.bfloat16)

    grid = (Mp // tm, Np // tn, Kp // tk)

    in_itemsize = jnp.dtype(xp.dtype).itemsize
    # Truthful streamed traffic, including x/w re-reads across the j/i axes.
    bytes_accessed = (
        in_itemsize * (Mp * Kp * (Np // tn) + Kp * Np * (Mp // tm))
        + 4 * (Mp * Np + Np)
    )

    out_padded = pl.pallas_call(
        lin_kernel,
        out_shape=jax.ShapeDtypeStruct((Mp, Np), jnp.float32),
        grid_spec=pltpu.PrefetchScalarGridSpec(
            num_scalar_prefetch=0,
            grid=grid,
            in_specs=[
                pl.BlockSpec((tm, tk), lambda i, j, k: (i, k)),
                pl.BlockSpec((tk, tn), lambda i, j, k: (k, j)),
                pl.BlockSpec((1, tn), lambda i, j, k: (0, j)),
            ],
            out_specs=pl.BlockSpec((tm, tn), lambda i, j, k: (i, j)),
        ),
        compiler_params=pltpu.CompilerParams(
            dimension_semantics=("parallel", "parallel", "arbitrary"),
            vmem_limit_bytes=48 * 1024 * 1024,
        ),
        cost_estimate=pl.CostEstimate(
            flops=2 * Mp * Np * Kp,
            bytes_accessed=bytes_accessed,
            transcendentals=0,
        ),
    )(xp, wp, bp)

    out = out_padded
    if Mp != M or Np != N:
        out = out[:M, :N]
    if out.dtype != out_dtype:
        out = out.astype(out_dtype)
    return out


if __name__ == "__main__":
    key = jax.random.PRNGKey(0)
    kx, kw, kb = jax.random.split(key, 3)

    # Small shapes consistent with Lin (rows x in_features -> out_features).
    M, K, N = 16, 32, 64
    x = jax.random.normal(kx, (M, K), dtype=jnp.float32)
    w = jax.random.normal(kw, (K, N), dtype=jnp.float32) * 0.1
    b = jax.random.normal(kb, (N,), dtype=jnp.float32) * 0.1

    out = jax.block_until_ready(lin_forward(x, w, b))
    ref = x @ w + b
    assert out.shape == (M, N)
    assert jnp.allclose(out, ref, atol=1e-5, rtol=1e-5)

    # Multi-tile path: grid > 1 on every axis (multi-step K reduction) to
    # validate the write-at-k0 / accumulate-otherwise logic and the
    # >=2-parallel-block tile adjustment.
    M2, K2, N2 = 384, 1024, 768
    kx2, kw2, kb2 = jax.random.split(jax.random.PRNGKey(1), 3)
    x2 = jax.random.normal(kx2, (M2, K2), dtype=jnp.float32)
    w2 = jax.random.normal(kw2, (K2, N2), dtype=jnp.float32) * 0.05
    b2 = jax.random.normal(kb2, (N2,), dtype=jnp.float32) * 0.05

    out2 = jax.block_until_ready(lin_forward(x2, w2, b2))
    ref2 = x2 @ w2 + b2
    assert out2.shape == (M2, N2)
    assert jnp.allclose(out2, ref2, atol=1e-4, rtol=1e-4)

    # Ragged (off-tile) shapes: exercises the minimal sub-tile padding path.
    M3, K3, N3 = 100, 300, 200
    kx3, kw3, kb3 = jax.random.split(jax.random.PRNGKey(2), 3)
    x3 = jax.random.normal(kx3, (M3, K3), dtype=jnp.float32)
    w3 = jax.random.normal(kw3, (K3, N3), dtype=jnp.float32) * 0.05
    b3 = jax.random.normal(kb3, (N3,), dtype=jnp.float32) * 0.05

    out3 = jax.block_until_ready(lin_forward(x3, w3, b3))
    ref3 = x3 @ w3 + b3
    assert out3.shape == (M3, N3)
    assert jnp.allclose(out3, ref3, atol=1e-4, rtol=1e-4)

    print("KERNEL_OK")
</pallas_src>

<mosaic_0001>
module attributes {stable_mosaic.version = 11 : i64} {
  func.func @lin_kernel(%arg0: i32, %arg1: i32, %arg2: i32, %arg3: memref<16x128xf32, #tpu.memory_space<vmem>>, %arg4: memref<128x128xf32, #tpu.memory_space<vmem>>, %arg5: memref<1x128xf32, #tpu.memory_space<vmem>>, %arg6: memref<16x128xf32, #tpu.memory_space<vmem>>) attributes {dimension_semantics = [#tpu.dimension_semantics<parallel>, #tpu.dimension_semantics<parallel>, #tpu.dimension_semantics<arbitrary>], iteration_bounds = array<i64: 1, 1, 1>, scalar_prefetch = 0 : i64, scratch_operands = 0 : i64, tpu.core_type = #tpu.core_type<tc>, window_params = [{transform_indices = @transform_0, window_bounds = array<i64: 16, 128>}, {transform_indices = @transform_1, window_bounds = array<i64: 128, 128>}, {transform_indices = @transform_2, window_bounds = array<i64: 1, 128>}, {transform_indices = @transform_3, window_bounds = array<i64: 16, 128>}]} {
    %c0 = arith.constant 0 : index
    %c0_0 = arith.constant 0 : index
    %0 = vector.load %arg3[%c0, %c0_0] : memref<16x128xf32, #tpu.memory_space<vmem>>, vector<16x128xf32>
    %c0_1 = arith.constant 0 : index
    %c0_2 = arith.constant 0 : index
    %1 = vector.load %arg4[%c0_1, %c0_2] : memref<128x128xf32, #tpu.memory_space<vmem>>, vector<128x128xf32>
    %cst = arith.constant dense<0.000000e+00> : vector<16x128xf32>
    %2 = tpu.matmul %0, %1, %cst {dimension_numbers = #tpu.dot_dimension_numbers<[1], [0], [0], [1], [0, 0, 1, 1], [], []>} : vector<16x128xf32>, vector<128x128xf32>, vector<16x128xf32> -> vector<16x128xf32>
    %c0_i32 = arith.constant 0 : i32
    %3 = arith.cmpi eq, %arg2, %c0_i32 : i32
    %4 = arith.extui %3 : i1 to i32
    %c0_i32_3 = arith.constant 0 : i32
    %5 = arith.cmpi ne, %4, %c0_i32_3 : i32
    scf.if %5 {
      %c0_6 = arith.constant 0 : index
      %c0_7 = arith.constant 0 : index
      %9 = vector.load %arg5[%c0_6, %c0_7] : memref<1x128xf32, #tpu.memory_space<vmem>>, vector<1x128xf32>
      %10 = vector.broadcast %9 : vector<1x128xf32> to vector<16x128xf32>
      %11 = arith.addf %2, %10 : vector<16x128xf32>
      %c0_8 = arith.constant 0 : index
      %c0_9 = arith.constant 0 : index
      %12 = vector.load %arg6[%c0_8, %c0_9] : memref<16x128xf32, #tpu.memory_space<vmem>>, vector<16x128xf32>
      tpu.vector_store %arg6[%c0_8, %c0_9], %11 {strides = array<i32>} : memref<16x128xf32, #tpu.memory_space<vmem>>, vector<16x128xf32>,
    } else {
    }
    %c0_i32_4 = arith.constant 0 : i32
    %6 = arith.cmpi sgt, %arg2, %c0_i32_4 : i32
    %7 = arith.extui %6 : i1 to i32
    %c0_i32_5 = arith.constant 0 : i32
    %8 = arith.cmpi ne, %7, %c0_i32_5 : i32
    scf.if %8 {
      %c0_6 = arith.constant 0 : index
      %c0_7 = arith.constant 0 : index
      %9 = vector.load %arg6[%c0_6, %c0_7] : memref<16x128xf32, #tpu.memory_space<vmem>>, vector<16x128xf32>
      %10 = arith.addf %9, %2 : vector<16x128xf32>
      %c0_8 = arith.constant 0 : index
      %c0_9 = arith.constant 0 : index
      %11 = vector.load %arg6[%c0_8, %c0_9] : memref<16x128xf32, #tpu.memory_space<vmem>>, vector<16x128xf32>
      tpu.vector_store %arg6[%c0_8, %c0_9], %10 {strides = array<i32>} : memref<16x128xf32, #tpu.memory_space<vmem>>, vector<16x128xf32>,
    } else {
    }
    return
  }
  func.func @transform_0(%arg0: i32, %arg1: i32, %arg2: i32) -> (i32, i32) {
    %c0_i32 = arith.constant 0 : i32
    return %arg0, %arg2 : i32, i32
  }
  func.func @transform_1(%arg0: i32, %arg1: i32, %arg2: i32) -> (i32, i32) {
    %c0_i32 = arith.constant 0 : i32
    return %arg2, %arg1 : i32, i32
  }
  func.func @transform_2(%arg0: i32, %arg1: i32, %arg2: i32) -> (i32, i32) {
    %c0_i32 = arith.constant 0 : i32
    %c0_i32_0 = arith.constant 0 : i32
    return %c0_i32, %arg1 : i32, i32
  }
  func.func @transform_3(%arg0: i32, %arg1: i32, %arg2: i32) -> (i32, i32) {
    %c0_i32 = arith.constant 0 : i32
    return %arg0, %arg1 : i32, i32
  }
}

</mosaic_0001>

<llo_original>
// kernel: tpu_custom_call.1
$region0: #{tpu_custom_call.1}
  #allocation0 [shape = 'u32[]', space=smem, size = 0x4, offset = 0x4, fixed_abs, tag = 'smem constant byte address 0x4 - core index']
  #allocation1 [shape = 'u32[72,128]{1,0:T(1,128)}', space=vmem, size = 0x9000, scoped, tag = 'internal scratch']
  %s0 = inlined_call_operand.hbm [shape: f32[16,128], index: 0, kind: input, shape index: {}]
  %s1 = inlined_call_operand.hbm [shape: f32[128,128], index: 1, kind: input, shape index: {}]
  %s2 = inlined_call_operand.vmem [shape: f32[1,128], index: 2, kind: input, shape index: {}]
  %s3 = inlined_call_operand.hbm [shape: f32[16,128], index: 3, kind: output, shape index: {}]
  %s4 = sld [smem:[#allocation0]]
  $region38: #{tpu_custom_call.1} parent=0
    _
  %s6 = ssub.s32 1, %s4
  %s7 = scalar_select 0, %s6, %s4
  $region1: #{tpu_custom_call.1} parent=0
    #allocation2 [shape = 'u8[8192]{0}', space=vmem, size = 0x2000, scoped, tag = 'input window, operand 0, single buffered']
    #allocation3 [shape = 's32[1]{0}', space=sflag, size = 0x4, scoped, tag = 'scoped memory for tpu_custom_call.1']
    #allocation4 [shape = 's32[1]{0}', space=sflag, size = 0x4, scoped, tag = 'scoped memory for tpu_custom_call.1']
    #allocation5 [shape = 'u8[65536]{0}', space=vmem, size = 0x10000, scoped, tag = 'input window, operand 1, single buffered']
    #allocation6 [shape = 's32[1]{0}', space=sflag, size = 0x4, scoped, tag = 'scoped memory for tpu_custom_call.1']
    #allocation7 [shape = 'u8[8192]{0}', space=vmem, size = 0x2000, scoped, tag = 'output window, operand 0, single buffered']
    %8 = vsyncpa [#allocation3], 0
    %9 = vsyncpa [#allocation6], 0
    %10 = vsyncpa [#allocation4], 0
    // Predicated region
    $region2: #{tpu_custom_call.1} parent=1 // pred_check
      _
    $region3: #{tpu_custom_call.1} parent=1 // pred_check_branch
      %12 = sbr.rel (0) target = $region5
    $region4: #{tpu_custom_call.1} parent=1 // pred_region
      %14 = vsyncadd [#allocation3], 0
      %s15 = sshll.u32 %s0, 4
      %s16 = int_to_ptr.hbm [resolvable:$true] %s15
      %s17 = sshll.u32 [#allocation2], 4
      %s18 = int_to_ptr.vmem [resolvable:$true] %s17
      %23 = dma.hbm_to_vmem [thread:$0]  %s16, 256, %s18, [#allocation3], 128, 128, 8
    $region5: #{tpu_custom_call.1} parent=1 // pred_fallthru
      _
    // Predicated region
    $region6: #{tpu_custom_call.1} parent=1 // pred_check
      _
    $region7: #{tpu_custom_call.1} parent=1 // pred_check_branch
      %25 = sbr.rel (0) target = $region9
    $region8: #{tpu_custom_call.1} parent=1 // pred_region
      %27 = vsyncadd [#allocation6], 0
      %s28 = sshll.u32 %s1, 4
      %s29 = int_to_ptr.hbm [resolvable:$true] %s28
      %s30 = sshll.u32 [#allocation5], 4
      %s31 = int_to_ptr.vmem [resolvable:$true] %s30
      %36 = dma.hbm_to_vmem [thread:$0]  %s29, 2048, %s31, [#allocation6], 128, 128, 8
    $region9: #{tpu_custom_call.1} parent=1 // pred_fallthru
      _
    // Predicated region
    $region10: #{tpu_custom_call.1} parent=1 // pred_check
      _
    $region11: #{tpu_custom_call.1} parent=1 // pred_check_branch
      %38 = sbr.rel (0) target = $region13
    $region12: #{tpu_custom_call.1} parent=1 // pred_region
      _
    $region13: #{tpu_custom_call.1} parent=1 // pred_fallthru
      _
    // Predicated region
    $region14: #{tpu_custom_call.1} parent=1 // pred_check
      _
    $region15: #{tpu_custom_call.1} parent=1 // pred_check_branch
      %40 = sbr.rel (0) target = $region17
    $region16: #{tpu_custom_call.1} parent=1 // pred_region
      %42 = dma.done [#allocation3], 256
    $region17: #{tpu_custom_call.1} parent=1 // pred_fallthru
      _
    // Predicated region
    $region18: #{tpu_custom_call.1} parent=1 // pred_check
      _
    $region19: #{tpu_custom_call.1} parent=1 // pred_check_branch
      %44 = sbr.rel (0) target = $region21
    $region20: #{tpu_custom_call.1} parent=1 // pred_region
      %46 = dma.done [#allocation6], 2048
    $region21: #{tpu_custom_call.1} parent=1 // pred_fallthru
      _
    %v47 = vld [vmem:[#allocation2] sm:$0xff]
    %v48 = vld [vmem:[#allocation2 + $0x8] sm:$0xff]
    %v49 = vld [vmem:[#allocation5] sm:$0xff]
    %v50 = vld [vmem:[#allocation5 + $0x8] sm:$0xff]
    %v51 = vld [vmem:[#allocation5 + $0x10] sm:$0xff]
    %v52 = vld [vmem:[#allocation5 + $0x18] sm:$0xff]
    %v53 = vld [vmem:[#allocation5 + $0x20] sm:$0xff]
    %v54 = vld [vmem:[#allocation5 + $0x28] sm:$0xff]
    %v55 = vld [vmem:[#allocation5 + $0x30] sm:$0xff]
    %v56 = vld [vmem:[#allocation5 + $0x38] sm:$0xff]
    %v57 = vld [vmem:[#allocation5 + $0x40] sm:$0xff]
    %v58 = vld [vmem:[#allocation5 + $0x48] sm:$0xff]
    %v59 = vld [vmem:[#allocation5 + $0x50] sm:$0xff]
    %v60 = vld [vmem:[#allocation5 + $0x58] sm:$0xff]
    %v61 = vld [vmem:[#allocation5 + $0x60] sm:$0xff]
    %v62 = vld [vmem:[#allocation5 + $0x68] sm:$0xff]
    %v63 = vld [vmem:[#allocation5 + $0x70] sm:$0xff]
    %v64 = vld [vmem:[#allocation5 + $0x78] sm:$0xff]
    %65 = vmatpush.msra.mxu0 %v64
    %66 = vmatpush.msra.mxu0 %v63
    %67 = vmatpush.msra.mxu0 %v62
    %68 = vmatpush.msra.mxu0 %v61
    %69 = vmatpush.msra.mxu0 %v60
    %70 = vmatpush.msra.mxu0 %v59
    %71 = vmatpush.msra.mxu0 %v58
    %72 = vmatpush.msra.mxu0 %v57
    %73 = vmatpush.msra.mxu0 %v56
    %74 = vmatpush.msra.mxu0 %v55
    %75 = vmatpush.msra.mxu0 %v54
    %76 = vmatpush.msra.mxu0 %v53
    %77 = vmatpush.msra.mxu0 %v52
    %78 = vmatpush.msra.mxu0 %v51
    %79 = vmatpush.msra.mxu0 %v50
    %80 = vmatpush.msra.mxu0 %v49
    %81 = vmatmul.f32.gmra.mxu0 %v47
    %v82 = vpop.f32.mrf.mxu0
    %v83 = vadd.f32 0.0, %v82
    %84 = vmatmul.f32.gmra.mxu0 %v48
    %v85 = vpop.f32.mrf.mxu0
    %v86 = vadd.f32 0.0, %v85
    %87 = vdwg.mxu0
    %p88 = scmp.eq.s32.totalorder 0, 0
    // Predicated region
    $region22: #{tpu_custom_call.1} parent=1 // pred_check
      %p89 = pneg %p88
    $region23: #{tpu_custom_call.1} parent=1 // pred_check_branch
      %91 = sbr.rel (%p89) target = $region25
    $region24: #{tpu_custom_call.1} parent=1 // pred_region
      %v92 = vld [vmem:[%s2] sm:$0x1]
      %v94 = vperm.slane %v92, 0
      %v96 = vadd.f32 %v83, %v94
      %v97 = vadd.f32 %v86, %v94
      %98 = vst [vmem:[#allocation7] sm:$0xff] %v96
      %99 = vst [vmem:[#allocation7 + $0x8] sm:$0xff] %v97
    $region25: #{tpu_custom_call.1} parent=1 // pred_fallthru
      _
    %p100 = scmp.gt.s32.totalorder 0, 0
    // Predicated region
    $region26: #{tpu_custom_call.1} parent=1 // pred_check
      %p101 = pneg %p100
    $region27: #{tpu_custom_call.1} parent=1 // pred_check_branch
      %103 = sbr.rel (%p101) target = $region29
    $region28: #{tpu_custom_call.1} parent=1 // pred_region
      %v104 = vld [vmem:[#allocation7] sm:$0xff]
      %v105 = vld [vmem:[#allocation7 + $0x8] sm:$0xff]
      %v106 = vadd.f32 %v104, %v83
      %v107 = vadd.f32 %v105, %v86
      %108 = vst [vmem:[#allocation7] sm:$0xff] %v106
      %109 = vst [vmem:[#allocation7 + $0x8] sm:$0xff] %v107
    $region29: #{tpu_custom_call.1} parent=1 // pred_fallthru
      _
    // Predicated region
    $region30: #{tpu_custom_call.1} parent=1 // pred_check
      _
    $region31: #{tpu_custom_call.1} parent=1 // pred_check_branch
      %111 = sbr.rel (0) target = $region33
    $region32: #{tpu_custom_call.1} parent=1 // pred_region
      %113 = vsyncadd [#allocation4], 0
      %s114 = sshll.u32 [#allocation7], 4
      %s115 = int_to_ptr.vmem [resolvable:$true] %s114
      %s116 = sshll.u32 %s3, 4
      %s117 = int_to_ptr.hbm [resolvable:$true] %s116
      %122 = dma.vmem_to_hbm [thread:$0]  %s115, 256, %s117, [#allocation4], 128, 128, 8
    $region33: #{tpu_custom_call.1} parent=1 // pred_fallthru
      _
    // Predicated region
    $region34: #{tpu_custom_call.1} parent=1 // pred_check
      _
    $region35: #{tpu_custom_call.1} parent=1 // pred_check_branch
      %124 = sbr.rel (0) target = $region37
    $region36: #{tpu_custom_call.1} parent=1 // pred_region
      %126 = dma.done [#allocation4], 256
    $region37: #{tpu_custom_call.1} parent=1 // pred_fallthru
      _
    %127 = vsyncpa [#allocation3], 1
    %128 = vsyncpa [#allocation6], 1
    %129 = vsyncpa [#allocation4], 1

</llo_original>
